<compile_context>
chip_gen: v7x
topology: tpu7x:2x2x1
jax: 0.10.0
libtpu: 0.0.40
codegen_flags: <defaults>
</compile_context>

<pallas_src>
import functools

import jax
import jax.numpy as jnp
from jax.experimental import pallas as pl
from jax.experimental.pallas import tpu as pltpu

BN_EPS = 1e-5


# ---------------------------------------------------------------------------
# Pass 1: conv tile + per-tile BN partial statistics.
# ---------------------------------------------------------------------------
def _conv_stats_kernel(w_ref, p_ref, conv_ref, sum_ref, ssq_ref):
    # w_ref:    (Coutp, Kp)  bf16   (resident: constant index map)
    # p_ref:    (Kp,   TM)   bf16   im2col patch tile
    # conv_ref: (Coutp, TM)  f32    lane-dense conv output tile
    # sum_ref:  (1, Coutp, 1) f32   per-tile partial sum over M
    # ssq_ref:  (1, Coutp, 1) f32   per-tile partial sum of squares over M
    conv = jnp.dot(w_ref[...], p_ref[...], preferred_element_type=jnp.float32)
    conv_ref[...] = conv
    # Lane-direction (XLU) reductions; zero-padded M columns contribute 0.
    sum_ref[...] = jnp.sum(conv, axis=-1, keepdims=True)[None]
    ssq_ref[...] = jnp.sum(conv * conv, axis=-1, keepdims=True)[None]


# ---------------------------------------------------------------------------
# Pass 2: folded BN affine (scale/shift) + ReLU.
# ---------------------------------------------------------------------------
def _bn_relu_kernel(conv_ref, scale_ref, shift_ref, out_ref):
    # conv_ref/out_ref: (Coutp, TM) f32 ; scale/shift: (Coutp, 1) f32
    out_ref[...] = jnp.maximum(conv_ref[...] * scale_ref[...] + shift_ref[...], 0.0)


# ---------------------------------------------------------------------------
# Wrapper glue.
# ---------------------------------------------------------------------------
def _round_up(x, m):
    return (x + m - 1) // m * m


def _im2col_km(x_nchw, kernel_size, stride, padding):
    """NCHW -> (K, M) patch matrix; K ordered (ci, kh, kw), M ordered (n, oh, ow)."""
    n, cin, h, w = x_nchw.shape
    kh = kw = kernel_size
    oh = (h + 2 * padding - kh) // stride + 1
    ow = (w + 2 * padding - kw) // stride + 1
    xp = jnp.pad(x_nchw, ((0, 0), (0, 0), (padding, padding), (padding, padding)))

    cols = []
    for i in range(kh):
        for j in range(kw):
            sl = xp[:, :, i:i + stride * (oh - 1) + 1:stride,
                          j:j + stride * (ow - 1) + 1:stride]  # (N, Cin, OH, OW)
            cols.append(sl)
    p = jnp.stack(cols, axis=2)                     # (N, Cin, KH*KW, OH, OW)
    p = jnp.transpose(p, (1, 2, 0, 3, 4))           # (Cin, KH*KW, N, OH, OW)
    p = p.reshape(cin * kh * kw, n * oh * ow)       # (K, M)
    return p, oh, ow


@functools.partial(jax.jit, static_argnames=("kernel_size", "stride", "padding"))
def basic_block_forward(x_nchw, weight, bias, gamma, beta,
                        kernel_size=7, stride=1, padding=1):
    """Conv(7x7, pad=1) -> BN(training-mode batch stats) -> ReLU, NCHW in/out.

    Note: `bias` is accepted for interface parity but is mathematically
    cancelled by the training-mode BN mean subtraction, so it is not used.
    """
    del bias  # exactly cancelled by BN mean subtraction
    n, cin, h, w = x_nchw.shape
    cout = weight.shape[0]

    patches, oh, ow = _im2col_km(x_nchw, kernel_size, stride, padding)  # (K, M) f32
    k, m = patches.shape

    kp = _round_up(k, 128)
    coutp = _round_up(cout, 8)
    m128 = _round_up(m, 128)
    tm = 128 if m128 <= 1024 else 512          # M tile (lane dim), multiple of 128
    mp = _round_up(m, tm)
    n_tiles = mp // tm

    # bf16 matmul operands (f32 accumulation); zero-pad K, M, Cout.
    patches_p = jnp.pad(patches.astype(jnp.bfloat16), ((0, kp - k), (0, mp - m)))
    w_mat = weight.reshape(cout, -1)           # (Cout, K), K ordered (ci, kh, kw)
    w_p = jnp.pad(w_mat.astype(jnp.bfloat16), ((0, coutp - cout), (0, kp - k)))

    # ---- Pass 1: conv + per-tile partial BN stats (grid over M, parallel) ----
    conv, psum, pssq = pl.pallas_call(
        _conv_stats_kernel,
        out_shape=(
            jax.ShapeDtypeStruct((coutp, mp), jnp.float32),
            jax.ShapeDtypeStruct((n_tiles, coutp, 1), jnp.float32),
            jax.ShapeDtypeStruct((n_tiles, coutp, 1), jnp.float32),
        ),
        grid_spec=pltpu.PrefetchScalarGridSpec(
            num_scalar_prefetch=0,
            grid=(n_tiles,),
            in_specs=[
                pl.BlockSpec((coutp, kp), lambda i: (0, 0)),   # weights (resident)
                pl.BlockSpec((kp, tm), lambda i: (0, i)),      # patch tile
            ],
            out_specs=(
                pl.BlockSpec((coutp, tm), lambda i: (0, i)),   # conv tile
                pl.BlockSpec((1, coutp, 1), lambda i: (i, 0, 0)),
                pl.BlockSpec((1, coutp, 1), lambda i: (i, 0, 0)),
            ),
        ),
        compiler_params=pltpu.CompilerParams(dimension_semantics=("parallel",)),
    )(w_p, patches_p)

    # ---- Combine tiny per-tile partials into global scale/shift (O(Cout)) ----
    m_f = jnp.float32(m)
    total_sum = jnp.sum(psum[:, :, 0], axis=0)                 # (Coutp,)
    total_ssq = jnp.sum(pssq[:, :, 0], axis=0)                 # (Coutp,)
    mean = total_sum / m_f
    var = jnp.maximum(total_ssq / m_f - mean * mean, 0.0)      # biased variance
    gamma_p = jnp.pad(gamma.astype(jnp.float32), (0, coutp - cout), constant_values=1.0)
    beta_p = jnp.pad(beta.astype(jnp.float32), (0, coutp - cout))
    scale = (gamma_p * jax.lax.rsqrt(var + BN_EPS)).reshape(coutp, 1)
    shift = (beta_p - mean * gamma_p * jax.lax.rsqrt(var + BN_EPS)).reshape(coutp, 1)

    # ---- Pass 2: y = max(conv*scale + shift, 0) (grid over M, parallel) ----
    out_flat = pl.pallas_call(
        _bn_relu_kernel,
        out_shape=jax.ShapeDtypeStruct((coutp, mp), jnp.float32),
        grid_spec=pltpu.PrefetchScalarGridSpec(
            num_scalar_prefetch=0,
            grid=(n_tiles,),
            in_specs=[
                pl.BlockSpec((coutp, tm), lambda i: (0, i)),
                pl.BlockSpec((coutp, 1), lambda i: (0, 0)),
                pl.BlockSpec((coutp, 1), lambda i: (0, 0)),
            ],
            out_specs=pl.BlockSpec((coutp, tm), lambda i: (0, i)),
        ),
        compiler_params=pltpu.CompilerParams(dimension_semantics=("parallel",)),
    )(conv, scale, shift)

    # (Coutp, Mp) -> slice padding -> (Cout, N, OH, OW) -> NCHW
    out = out_flat[:cout, :m].reshape(cout, n, oh, ow)
    return jnp.transpose(out, (1, 0, 2, 3))


# ---------------------------------------------------------------------------
# Plain-JAX reference (f32 conv + bias + training-mode BN + ReLU).
# ---------------------------------------------------------------------------
def _reference(x_nchw, weight, bias, gamma, beta, stride=1, padding=1):
    conv = jax.lax.conv_general_dilated(
        x_nchw, weight, window_strides=(stride, stride),
        padding=[(padding, padding), (padding, padding)],
        dimension_numbers=("NCHW", "OIHW", "NCHW"),
    ) + bias[None, :, None, None]
    mean = jnp.mean(conv, axis=(0, 2, 3), keepdims=True)
    var = jnp.mean((conv - mean) ** 2, axis=(0, 2, 3), keepdims=True)
    y = (conv - mean) * jax.lax.rsqrt(var + BN_EPS)
    y = y * gamma[None, :, None, None] + beta[None, :, None, None]
    return jnp.maximum(y, 0.0)


if __name__ == "__main__":
    # BasicBlock(inplane=4, outplane=8, kernel_size=7, stride=1, padding=1)
    N, CIN, H, W = 2, 4, 16, 16
    COUT, KSIZE, STRIDE, PAD = 8, 7, 1, 1

    key = jax.random.PRNGKey(0)
    kx, kw, kb, kg, kbe = jax.random.split(key, 5)

    x = jax.random.normal(kx, (N, CIN, H, W), dtype=jnp.float32)
    fan_in = CIN * KSIZE * KSIZE
    weight = jax.random.normal(kw, (COUT, CIN, KSIZE, KSIZE), dtype=jnp.float32) / jnp.sqrt(fan_in)
    bias = 0.1 * jax.random.normal(kb, (COUT,), dtype=jnp.float32)
    gamma = 1.0 + 0.1 * jax.random.normal(kg, (COUT,), dtype=jnp.float32)
    beta = 0.1 * jax.random.normal(kbe, (COUT,), dtype=jnp.float32)

    out = basic_block_forward(x, weight, bias, gamma, beta,
                              kernel_size=KSIZE, stride=STRIDE, padding=PAD)
    out = jax.block_until_ready(out)

    ref = _reference(x, weight, bias, gamma, beta, stride=STRIDE, padding=PAD)
    OH = OW = H + 2 * PAD - KSIZE + 1
    assert out.shape == ref.shape == (N, COUT, OH, OW)
    # bf16 matmul operands (f32 accumulation) -> small quantization error vs f32 ref.
    max_err = float(jnp.max(jnp.abs(out - ref)))
    assert max_err < 6e-2, max_err

    print("KERNEL_OK")
</pallas_src>

<mosaic_0001>
module attributes {stable_mosaic.version = 11 : i64} {
  func.func @_conv_stats_kernel(%arg0: i32, %arg1: memref<8x256xbf16, #tpu.memory_space<vmem>>, %arg2: memref<256x128xbf16, #tpu.memory_space<vmem>>, %arg3: memref<8x128xf32, #tpu.memory_space<vmem>>, %arg4: memref<1x8x1xf32, #tpu.memory_space<vmem>>, %arg5: memref<1x8x1xf32, #tpu.memory_space<vmem>>) attributes {dimension_semantics = [#tpu.dimension_semantics<parallel>], iteration_bounds = array<i64: 3>, scalar_prefetch = 0 : i64, scratch_operands = 0 : i64, tpu.core_type = #tpu.core_type<tc>, window_params = [{pipeline_mode = #tpu.pipeline_mode<synchronous>, transform_indices = @transform_0, window_bounds = array<i64: 8, 256>}, {transform_indices = @transform_1, window_bounds = array<i64: 256, 128>}, {transform_indices = @transform_2, window_bounds = array<i64: 8, 128>}, {transform_indices = @transform_3, window_bounds = array<i64: 1, 8, 1>}, {transform_indices = @transform_4, window_bounds = array<i64: 1, 8, 1>}]} {
    %c0 = arith.constant 0 : index
    %c0_0 = arith.constant 0 : index
    %0 = vector.load %arg1[%c0, %c0_0] : memref<8x256xbf16, #tpu.memory_space<vmem>>, vector<8x256xbf16>
    %c0_1 = arith.constant 0 : index
    %c0_2 = arith.constant 0 : index
    %1 = vector.load %arg2[%c0_1, %c0_2] : memref<256x128xbf16, #tpu.memory_space<vmem>>, vector<256x128xbf16>
    %cst = arith.constant dense<0.000000e+00> : vector<8x128xf32>
    %2 = tpu.matmul %0, %1, %cst {dimension_numbers = #tpu.dot_dimension_numbers<[1], [0], [0], [1], [0, 0, 1, 1], [], []>} : vector<8x256xbf16>, vector<256x128xbf16>, vector<8x128xf32> -> vector<8x128xf32>
    %c0_3 = arith.constant 0 : index
    %c0_4 = arith.constant 0 : index
    %3 = vector.load %arg3[%c0_3, %c0_4] : memref<8x128xf32, #tpu.memory_space<vmem>>, vector<8x128xf32>
    tpu.vector_store %arg3[%c0_3, %c0_4], %2 {strides = array<i32>} : memref<8x128xf32, #tpu.memory_space<vmem>>, vector<8x128xf32>,
    %cst_5 = arith.constant dense<0.000000e+00> : vector<8xf32>
    %4 = vector.multi_reduction <add>, %2, %cst_5 [1] : vector<8x128xf32> to vector<8xf32>
    %5 = vector.shape_cast %4 : vector<8xf32> to vector<8x1xf32>
    %6 = vector.shape_cast %5 : vector<8x1xf32> to vector<1x8x1xf32>
    %c0_6 = arith.constant 0 : index
    %c0_7 = arith.constant 0 : index
    %c0_8 = arith.constant 0 : index
    %7 = vector.load %arg4[%c0_6, %c0_7, %c0_8] : memref<1x8x1xf32, #tpu.memory_space<vmem>>, vector<1x8x1xf32>
    tpu.vector_store %arg4[%c0_6, %c0_7, %c0_8], %6 {strides = array<i32>} : memref<1x8x1xf32, #tpu.memory_space<vmem>>, vector<1x8x1xf32>,
    %8 = arith.mulf %2, %2 : vector<8x128xf32>
    %cst_9 = arith.constant dense<0.000000e+00> : vector<8xf32>
    %9 = vector.multi_reduction <add>, %8, %cst_9 [1] : vector<8x128xf32> to vector<8xf32>
    %10 = vector.shape_cast %9 : vector<8xf32> to vector<8x1xf32>
    %11 = vector.shape_cast %10 : vector<8x1xf32> to vector<1x8x1xf32>
    %c0_10 = arith.constant 0 : index
    %c0_11 = arith.constant 0 : index
    %c0_12 = arith.constant 0 : index
    %12 = vector.load %arg5[%c0_10, %c0_11, %c0_12] : memref<1x8x1xf32, #tpu.memory_space<vmem>>, vector<1x8x1xf32>
    tpu.vector_store %arg5[%c0_10, %c0_11, %c0_12], %11 {strides = array<i32>} : memref<1x8x1xf32, #tpu.memory_space<vmem>>, vector<1x8x1xf32>,
    return
  }
  func.func @transform_0(%arg0: i32) -> (i32, i32) {
    %c0_i32 = arith.constant 0 : i32
    %c0_i32_0 = arith.constant 0 : i32
    %c0_i32_1 = arith.constant 0 : i32
    return %c0_i32, %c0_i32_0 : i32, i32
  }
  func.func @transform_1(%arg0: i32) -> (i32, i32) {
    %c0_i32 = arith.constant 0 : i32
    %c0_i32_0 = arith.constant 0 : i32
    return %c0_i32, %arg0 : i32, i32
  }
  func.func @transform_2(%arg0: i32) -> (i32, i32) {
    %c0_i32 = arith.constant 0 : i32
    %c0_i32_0 = arith.constant 0 : i32
    return %c0_i32, %arg0 : i32, i32
  }
  func.func @transform_3(%arg0: i32) -> (i32, i32, i32) {
    %c0_i32 = arith.constant 0 : i32
    %c0_i32_0 = arith.constant 0 : i32
    %c0_i32_1 = arith.constant 0 : i32
    return %arg0, %c0_i32, %c0_i32_0 : i32, i32, i32
  }
  func.func @transform_4(%arg0: i32) -> (i32, i32, i32) {
    %c0_i32 = arith.constant 0 : i32
    %c0_i32_0 = arith.constant 0 : i32
    %c0_i32_1 = arith.constant 0 : i32
    return %arg0, %c0_i32, %c0_i32_0 : i32, i32, i32
  }
}

module attributes {stable_mosaic.version = 11 : i64} {
  func.func @_bn_relu_kernel(%arg0: i32, %arg1: memref<8x128xf32, #tpu.memory_space<vmem>>, %arg2: memref<8x1xf32, #tpu.memory_space<vmem>>, %arg3: memref<8x1xf32, #tpu.memory_space<vmem>>, %arg4: memref<8x128xf32, #tpu.memory_space<vmem>>) attributes {dimension_semantics = [#tpu.dimension_semantics<parallel>], iteration_bounds = array<i64: 3>, scalar_prefetch = 0 : i64, scratch_operands = 0 : i64, tpu.core_type = #tpu.core_type<tc>, window_params = [{transform_indices = @transform_0, window_bounds = array<i64: 8, 128>}, {pipeline_mode = #tpu.pipeline_mode<synchronous>, transform_indices = @transform_1, window_bounds = array<i64: 8, 1>}, {pipeline_mode = #tpu.pipeline_mode<synchronous>, transform_indices = @transform_2, window_bounds = array<i64: 8, 1>}, {transform_indices = @transform_3, window_bounds = array<i64: 8, 128>}]} {
    %c0 = arith.constant 0 : index
    %c0_0 = arith.constant 0 : index
    %0 = vector.load %arg1[%c0, %c0_0] : memref<8x128xf32, #tpu.memory_space<vmem>>, vector<8x128xf32>
    %c0_1 = arith.constant 0 : index
    %c0_2 = arith.constant 0 : index
    %1 = vector.load %arg2[%c0_1, %c0_2] : memref<8x1xf32, #tpu.memory_space<vmem>>, vector<8x1xf32>
    %2 = vector.broadcast %1 : vector<8x1xf32> to vector<8x128xf32>
    %3 = arith.mulf %0, %2 : vector<8x128xf32>
    %c0_3 = arith.constant 0 : index
    %c0_4 = arith.constant 0 : index
    %4 = vector.load %arg3[%c0_3, %c0_4] : memref<8x1xf32, #tpu.memory_space<vmem>>, vector<8x1xf32>
    %5 = vector.broadcast %4 : vector<8x1xf32> to vector<8x128xf32>
    %6 = arith.addf %3, %5 : vector<8x128xf32>
    %cst = arith.constant 0.000000e+00 : f32
    %7 = vector.broadcast %cst : f32 to vector<8x128xf32>
    %8 = arith.maximumf %6, %7 : vector<8x128xf32>
    %c0_5 = arith.constant 0 : index
    %c0_6 = arith.constant 0 : index
    %9 = vector.load %arg4[%c0_5, %c0_6] : memref<8x128xf32, #tpu.memory_space<vmem>>, vector<8x128xf32>
    tpu.vector_store %arg4[%c0_5, %c0_6], %8 {strides = array<i32>} : memref<8x128xf32, #tpu.memory_space<vmem>>, vector<8x128xf32>,
    return
  }
  func.func @transform_0(%arg0: i32) -> (i32, i32) {
    %c0_i32 = arith.constant 0 : i32
    %c0_i32_0 = arith.constant 0 : i32
    return %c0_i32, %arg0 : i32, i32
  }
  func.func @transform_1(%arg0: i32) -> (i32, i32) {
    %c0_i32 = arith.constant 0 : i32
    %c0_i32_0 = arith.constant 0 : i32
    %c0_i32_1 = arith.constant 0 : i32
    return %c0_i32, %c0_i32_0 : i32, i32
  }
  func.func @transform_2(%arg0: i32) -> (i32, i32) {
    %c0_i32 = arith.constant 0 : i32
    %c0_i32_0 = arith.constant 0 : i32
    %c0_i32_1 = arith.constant 0 : i32
    return %c0_i32, %c0_i32_0 : i32, i32
  }
  func.func @transform_3(%arg0: i32) -> (i32, i32) {
    %c0_i32 = arith.constant 0 : i32
    %c0_i32_0 = arith.constant 0 : i32
    return %c0_i32, %arg0 : i32, i32
  }
}

</mosaic_0001>

<llo_original>
// kernel: basic_block_forward.3
$region0: #{basic_block_forward.3}
  #allocation0 [shape = 'u32[]', space=smem, size = 0x4, offset = 0x4, fixed_abs, tag = 'smem constant byte address 0x4 - core index']
  #allocation1 [shape = 'u32[144,128]{1,0:T(1,128)}', space=vmem, size = 0x12000, scoped, tag = 'internal scratch']
  %s0 = inlined_call_operand.vmem [shape: f32[8,384], index: 0, kind: input, shape index: {}]
  %s1 = inlined_call_operand.vmem [shape: f32[8,1], index: 1, kind: input, shape index: {}]
  %s2 = inlined_call_operand.vmem [shape: f32[8,1], index: 2, kind: input, shape index: {}]
  %s3 = inlined_call_operand.vmem [shape: f32[8,384], index: 3, kind: output, shape index: {}]
  %s4 = sld [smem:[#allocation0]]
  $region45: #{basic_block_forward.3} parent=0
    _
  %s6 = ssub.s32 1, %s4
  %s7 = scalar_select 0, %s6, %s4
  loop: start=0, step=1, limit=5
  $region2: #{basic_block_forward.3} parent=0 // loop_pre_header
    _
  $region3: #{basic_block_forward.3} parent=0 // loop_header
    %s9 = sphi 0, %s13
    %p10 = scmp.ge.s32.totalorder %s9, 5
    %s19 = sphi 0, %s21
    %s22 = sphi 0, %s19
    %s23 = sphi 0, %s22
    %s39 = sphi 0, %s23
    %s43 = sphi 0, %s43
    %s45 = sphi 0, %s43
    %s46 = sphi 0, %s45
    %s60 = sphi 0, %s46
    %s64 = sphi 0, %s64
    %s66 = sphi 0, %s64
    %s67 = sphi 0, %s66
    %s81 = sphi 0, %s67
    %s87 = sphi 0, %s89
    %s90 = sphi 0, %s87
    %s91 = sphi 0, %s90
    %s107 = sphi 0, %s91
  $region4: #{basic_block_forward.3} parent=0 // loop_header_branch
    %12 = sbr.rel (%p10) target = $region8
  $region5: #{basic_block_forward.3} parent=0 // loop_body
    %s14 = ssub.s32 %s9, 1
    %s15 = ssub.s32 %s9, 2
    %s16 = sadd.s32 %s9, 1
    %s17 = ssub.s32 %s9, %s16
    %p18 = scmp.eq.s32.totalorder %s17, 0
    %s20 = sadd.s32 %s19, 1
    %s21 = scalar_select %p18, %s19, %s20
    %p24 = pneg %p18
    %p25 = scmp.eq.s32.totalorder %s9, 2
    %p26 = por %p24, %p25
    %p27 = scmp.ne.s32.totalorder %s19, %s22
    %p28 = scmp.eq.s32.totalorder %s9, 0
    %p29 = por %p27, %p28
    %p30 = scmp.ne.s32.totalorder %s19, %s22
    %p31 = scmp.eq.s32.totalorder %s14, 2
    %p32 = por %p30, %p31
    %p33 = scmp.ne.s32.totalorder %s22, %s23
    %p34 = scmp.eq.s32.totalorder %s14, 0
    %p35 = por %p33, %p34
    %p36 = scmp.ne.s32.totalorder %s22, %s23
    %p37 = scmp.eq.s32.totalorder %s15, 2
    %p38 = por %p36, %p37
    %p40 = scmp.ne.s32.totalorder %s23, %s39
    %p41 = scmp.eq.s32.totalorder %s15, 0
    %p42 = por %p40, %p41
    %s44 = sadd.s32 %s43, 1
    %p47 = scmp.eq.s32.totalorder %s9, 2
    %p48 = scmp.ne.s32.totalorder %s43, %s45
    %p49 = scmp.eq.s32.totalorder %s9, 0
    %p50 = por %p48, %p49
    %p51 = scmp.ne.s32.totalorder %s43, %s45
    %p52 = scmp.eq.s32.totalorder %s14, 2
    %p53 = por %p51, %p52
    %p54 = scmp.ne.s32.totalorder %s45, %s46
    %p55 = scmp.eq.s32.totalorder %s14, 0
    %p56 = por %p54, %p55
    %p57 = scmp.ne.s32.totalorder %s45, %s46
    %p58 = scmp.eq.s32.totalorder %s15, 2
    %p59 = por %p57, %p58
    %p61 = scmp.ne.s32.totalorder %s46, %s60
    %p62 = scmp.eq.s32.totalorder %s15, 0
    %p63 = por %p61, %p62
    %s65 = sadd.s32 %s64, 1
    %p68 = scmp.eq.s32.totalorder %s9, 2
    %p69 = scmp.ne.s32.totalorder %s64, %s66
    %p70 = scmp.eq.s32.totalorder %s9, 0
    %p71 = por %p69, %p70
    %p72 = scmp.ne.s32.totalorder %s64, %s66
    %p73 = scmp.eq.s32.totalorder %s14, 2
    %p74 = por %p72, %p73
    %p75 = scmp.ne.s32.totalorder %s66, %s67
    %p76 = scmp.eq.s32.totalorder %s14, 0
    %p77 = por %p75, %p76
    %p78 = scmp.ne.s32.totalorder %s66, %s67
    %p79 = scmp.eq.s32.totalorder %s15, 2
    %p80 = por %p78, %p79
    %p82 = scmp.ne.s32.totalorder %s67, %s81
    %p83 = scmp.eq.s32.totalorder %s15, 0
    %p84 = por %p82, %p83
    %s85 = ssub.s32 %s9, %s16
    %p86 = scmp.eq.s32.totalorder %s85, 0
    %s88 = sadd.s32 %s87, 1
    %s89 = scalar_select %p86, %s87, %s88
    %p92 = pneg %p86
    %p93 = scmp.eq.s32.totalorder %s9, 2
    %p94 = por %p92, %p93
    %p95 = scmp.ne.s32.totalorder %s87, %s90
    %p96 = scmp.eq.s32.totalorder %s9, 0
    %p97 = por %p95, %p96
    %p98 = scmp.ne.s32.totalorder %s87, %s90
    %p99 = scmp.eq.s32.totalorder %s14, 2
    %p100 = por %p98, %p99
    %p101 = scmp.ne.s32.totalorder %s90, %s91
    %p102 = scmp.eq.s32.totalorder %s14, 0
    %p103 = por %p101, %p102
    %p104 = scmp.ne.s32.totalorder %s90, %s91
    %p105 = scmp.eq.s32.totalorder %s15, 2
    %p106 = por %p104, %p105
    %p108 = scmp.ne.s32.totalorder %s91, %s107
    %p109 = scmp.eq.s32.totalorder %s15, 0
    %p110 = por %p108, %p109
    %p111 = scmp.le.s32.totalorder 1, %s9
    %p112 = scmp.lt.s32.totalorder %s9, 4
    %p113 = pnand %p111, %p112
    %p114 = pneg %p113
    // Predicated region
    $region9: #{basic_block_forward.3} parent=5 // pred_check
      _
    $region10: #{basic_block_forward.3} parent=5 // pred_check_branch
      %116 = sbr.rel (%p113) target = $region12
    $region11: #{basic_block_forward.3} parent=5 // pred_region
      %s117 = ssub.s32 %s9, 1
      // Predicated region
      $region13: #{basic_block_forward.3} parent=11 // pred_check
        %p118 = pneg %p56
      $region14: #{basic_block_forward.3} parent=11 // pred_check_branch
        %120 = sbr.rel (%p118) target = $region16
      $region15: #{basic_block_forward.3} parent=11 // pred_region
        _
      $region16: #{basic_block_forward.3} parent=11 // pred_fallthru
        _
      // Predicated region
      $region17: #{basic_block_forward.3} parent=11 // pred_check
        %p121 = pneg %p77
      $region18: #{basic_block_forward.3} parent=11 // pred_check_branch
        %123 = sbr.rel (%p121) target = $region20
      $region19: #{basic_block_forward.3} parent=11 // pred_region
        _
      $region20: #{basic_block_forward.3} parent=11 // pred_fallthru
        _
    $region12: #{basic_block_forward.3} parent=5 // pred_fallthru
      _
    %p124 = scmp.lt.s32.totalorder %s9, 3
    // Predicated region
    $region21: #{basic_block_forward.3} parent=5 // pred_check
      %p125 = pneg %p124
    $region22: #{basic_block_forward.3} parent=5 // pred_check_branch
      %127 = sbr.rel (%p125) target = $region24
    $region23: #{basic_block_forward.3} parent=5 // pred_region
      // Predicated region
      $region25: #{basic_block_forward.3} parent=23 // pred_check
        %p128 = pneg %p29
      $region26: #{basic_block_forward.3} parent=23 // pred_check_branch
        %130 = sbr.rel (%p128) target = $region28
      $region27: #{basic_block_forward.3} parent=23 // pred_region
        %p131 = scmp.lt.s32.totalorder %s9, 2
        %s132 = scalar_select %p131, %s9, 2
        %s133 = smul.addr %s132, 8
        %s134 = scalar_lea.vmem %s0, %s133
      $region28: #{basic_block_forward.3} parent=23 // pred_fallthru
        _
    $region24: #{basic_block_forward.3} parent=5 // pred_fallthru
      _
    %p135 = scmp.le.s32.totalorder 1, %s9
    %p136 = scmp.lt.s32.totalorder %s9, 4
    %p137 = pnand %p135, %p136
    %p138 = pneg %p137
    // Predicated region
    $region29: #{basic_block_forward.3} parent=5 // pred_check
      _
    $region30: #{basic_block_forward.3} parent=5 // pred_check_branch
      %140 = sbr.rel (%p137) target = $region32
    $region31: #{basic_block_forward.3} parent=5 // pred_region
      %s141 = ssub.s32 %s9, 1
      %p142 = scmp.lt.s32.totalorder %s14, 2
      %s143 = scalar_select %p142, %s14, 2
      %s144 = smul.addr %s143, 8
      %s145 = scalar_lea.vmem %s0, %s144
      %p146 = pneg %p35
      %p147 = pneg %p32
      %p148 = pneg %p56
      %p149 = pneg %p53
      %p150 = pneg %p77
      %p151 = pneg %p74
      %p152 = pneg %p103
      %p153 = pneg %p100
      %p154 = scmp.lt.s32.totalorder %s14, 2
      %s155 = scalar_select %p154, %s14, 2
      %s156 = smul.addr %s155, 8
      %s157 = scalar_lea.vmem %s3, %s156
      %p158 = scmp.lt.s32.totalorder %s14, 2
      %s159 = scalar_select %p158, %s14, 2
      %s160 = smul.addr %s159, 8
      %s161 = scalar_lea.vmem %s0, %s160
      %p162 = scmp.lt.s32.totalorder %s14, 2
      %s163 = scalar_select %p162, %s14, 2
      %s164 = smul.addr %s163, 8
      %s165 = scalar_lea.vmem %s3, %s164
      %v166 = vld [vmem:[%s161] sm:$0xff]
      %v167 = vld [vmem:[%s1] sm:$0xff]
      %169 = vset.pattern.permute.xlu0 0
      %170 = vperm.xlu0 %169, %v167
      %v171 = vpop.permute.xlu0 %170
      %v173 = vmul.f32 %v166, %v171
      %v174 = vld [vmem:[%s2] sm:$0xff]
      %176 = vset.pattern.permute.xlu0 0
      %177 = vperm.xlu0 %176, %v174
      %v178 = vpop.permute.xlu0 %177
      %v180 = vadd.f32 %v173, %v178
      %v181 = vmax.f32 %v180, 0.0
      %182 = vst [vmem:[%s165] sm:$0xff] %v181
      %p183 = scmp.lt.s32.totalorder %s14, 2
      %s184 = scalar_select %p183, %s14, 2
      %s185 = smul.addr %s184, 8
      %s186 = scalar_lea.vmem %s3, %s185
      // Predicated region
      $region33: #{basic_block_forward.3} parent=31 // pred_check
        %p187 = pneg %p100
      $region34: #{basic_block_forward.3} parent=31 // pred_check_branch
        %189 = sbr.rel (%p187) target = $region36
      $region35: #{basic_block_forward.3} parent=31 // pred_region
        _
      $region36: #{basic_block_forward.3} parent=31 // pred_fallthru
        _
    $region32: #{basic_block_forward.3} parent=5 // pred_fallthru
      _
    %p190 = scmp.le.s32.totalorder 2, %s9
    // Predicated region
    $region37: #{basic_block_forward.3} parent=5 // pred_check
      %p191 = pneg %p190
    $region38: #{basic_block_forward.3} parent=5 // pred_check_branch
      %193 = sbr.rel (%p191) target = $region40
    $region39: #{basic_block_forward.3} parent=5 // pred_region
      %s194 = ssub.s32 %s9, 2
      // Predicated region
      $region41: #{basic_block_forward.3} parent=39 // pred_check
        %p195 = pneg %p106
      $region42: #{basic_block_forward.3} parent=39 // pred_check_branch
        %197 = sbr.rel (%p195) target = $region44
      $region43: #{basic_block_forward.3} parent=39 // pred_region
        %p198 = scmp.lt.s32.totalorder %s15, 2
        %s199 = scalar_select %p198, %s15, 2
        %s200 = smul.addr %s199, 8
        %s201 = scalar_lea.vmem %s3, %s200
      $region44: #{basic_block_forward.3} parent=39 // pred_fallthru
        _
    $region40: #{basic_block_forward.3} parent=5 // pred_fallthru
      _
  $region6: #{basic_block_forward.3} parent=0 // loop_footer
    %s13 = sadd.s32 1, %s9
  $region7: #{basic_block_forward.3} parent=0 // loop_footer_branch
    %8 = sbr.rel target = $region3
  $region8: #{basic_block_forward.3} parent=0 // loop_exit
    _

// kernel: basic_block_forward.2
$region0: #{basic_block_forward.2}
  #allocation0 [shape = 'u32[]', space=smem, size = 0x4, offset = 0x4, fixed_abs, tag = 'smem constant byte address 0x4 - core index']
  #allocation1 [shape = 'u32[144,128]{1,0:T(1,128)}', space=vmem, size = 0x12000, scoped, tag = 'internal scratch']
  %s0 = inlined_call_operand.vmem [shape: bf16[8,256], index: 0, kind: input, shape index: {}]
  %s1 = inlined_call_operand.vmem [shape: bf16[256,384], index: 1, kind: input, shape index: {}]
  %s2 = inlined_call_operand.vmem [shape: f32[8,384], index: 2, kind: output, shape index: {0}]
  %s3 = inlined_call_operand.vmem [shape: f32[3,8,1], index: 3, kind: output, shape index: {1}]
  %s4 = inlined_call_operand.vmem [shape: f32[3,8,1], index: 4, kind: output, shape index: {2}]
  %5 = xla_tuple %s2, %s3, %s4
  %s6 = sld [smem:[#allocation0]]
  $region98: #{basic_block_forward.2} parent=0
    _
  %s8 = ssub.s32 1, %s6
  %s9 = scalar_select 0, %s8, %s6
  $region1: #{basic_block_forward.2} parent=0
    #allocation2 [shape = 'u8[131072]{0}', space=vmem, size = 0x20000, scoped, tag = 'input window, operand 1']
    loop: start=0, step=1, limit=5
    $region2: #{basic_block_forward.2} parent=1 // loop_pre_header
      _
    $region3: #{basic_block_forward.2} parent=1 // loop_header
      %s11 = sphi 0, %s15
      %p12 = scmp.ge.s32.totalorder %s11, 5
      %s19 = sphi 0, %s19
      %s21 = sphi 0, %s19
      %s22 = sphi 0, %s21
      %s36 = sphi 0, %s22
      %s42 = sphi 0, %s44
      %s45 = sphi 0, %s42
      %s46 = sphi 0, %s45
      %s62 = sphi 0, %s46
      %s68 = sphi 0, %s70
      %s71 = sphi 0, %s68
      %s72 = sphi 0, %s71
      %s88 = sphi 0, %s72
      %s94 = sphi 0, %s96
      %s97 = sphi 0, %s94
      %s98 = sphi 0, %s97
      %s114 = sphi 0, %s98
      %s120 = sphi 0, %s122
      %s123 = sphi 0, %s120
      %s124 = sphi 0, %s123
      %s140 = sphi 0, %s124
    $region4: #{basic_block_forward.2} parent=1 // loop_header_branch
      %14 = sbr.rel (%p12) target = $region8
    $region5: #{basic_block_forward.2} parent=1 // loop_body
      %s16 = ssub.s32 %s11, 1
      %s17 = ssub.s32 %s11, 2
      %s18 = sadd.s32 %s11, 1
      %s20 = sadd.s32 %s19, 1
      %p23 = scmp.eq.s32.totalorder %s11, 2
      %p24 = scmp.ne.s32.totalorder %s19, %s21
      %p25 = scmp.eq.s32.totalorder %s11, 0
      %p26 = por %p24, %p25
      %p27 = scmp.ne.s32.totalorder %s19, %s21
      %p28 = scmp.eq.s32.totalorder %s16, 2
      %p29 = por %p27, %p28
      %p30 = scmp.ne.s32.totalorder %s21, %s22
      %p31 = scmp.eq.s32.totalorder %s16, 0
      %p32 = por %p30, %p31
      %p33 = scmp.ne.s32.totalorder %s21, %s22
      %p34 = scmp.eq.s32.totalorder %s17, 2
      %p35 = por %p33, %p34
      %p37 = scmp.ne.s32.totalorder %s22, %s36
      %p38 = scmp.eq.s32.totalorder %s17, 0
      %p39 = por %p37, %p38
      %s40 = ssub.s32 %s11, %s18
      %p41 = scmp.eq.s32.totalorder %s40, 0
      %s43 = sadd.s32 %s42, 1
      %s44 = scalar_select %p41, %s42, %s43
      %p47 = pneg %p41
      %p48 = scmp.eq.s32.totalorder %s11, 2
      %p49 = por %p47, %p48
      %p50 = scmp.ne.s32.totalorder %s42, %s45
      %p51 = scmp.eq.s32.totalorder %s11, 0
      %p52 = por %p50, %p51
      %p53 = scmp.ne.s32.totalorder %s42, %s45
      %p54 = scmp.eq.s32.totalorder %s16, 2
      %p55 = por %p53, %p54
      %p56 = scmp.ne.s32.totalorder %s45, %s46
      %p57 = scmp.eq.s32.totalorder %s16, 0
      %p58 = por %p56, %p57
      %p59 = scmp.ne.s32.totalorder %s45, %s46
      %p60 = scmp.eq.s32.totalorder %s17, 2
      %p61 = por %p59, %p60
      %p63 = scmp.ne.s32.totalorder %s46, %s62
      %p64 = scmp.eq.s32.totalorder %s17, 0
      %p65 = por %p63, %p64
      %s66 = ssub.s32 %s11, %s18
      %p67 = scmp.eq.s32.totalorder %s66, 0
      %s69 = sadd.s32 %s68, 1
      %s70 = scalar_select %p67, %s68, %s69
      %p73 = pneg %p67
      %p74 = scmp.eq.s32.totalorder %s11, 2
      %p75 = por %p73, %p74
      %p76 = scmp.ne.s32.totalorder %s68, %s71
      %p77 = scmp.eq.s32.totalorder %s11, 0
      %p78 = por %p76, %p77
      %p79 = scmp.ne.s32.totalorder %s68, %s71
      %p80 = scmp.eq.s32.totalorder %s16, 2
      %p81 = por %p79, %p80
      %p82 = scmp.ne.s32.totalorder %s71, %s72
      %p83 = scmp.eq.s32.totalorder %s16, 0
      %p84 = por %p82, %p83
      %p85 = scmp.ne.s32.totalorder %s71, %s72
      %p86 = scmp.eq.s32.totalorder %s17, 2
      %p87 = por %p85, %p86
      %p89 = scmp.ne.s32.totalorder %s72, %s88
      %p90 = scmp.eq.s32.totalorder %s17, 0
      %p91 = por %p89, %p90
      %s92 = ssub.s32 %s11, %s18
      %p93 = scmp.eq.s32.totalorder %s92, 0
      %s95 = sadd.s32 %s94, 1
      %s96 = scalar_select %p93, %s94, %s95
      %p99 = pneg %p93
      %p100 = scmp.eq.s32.totalorder %s11, 2
      %p101 = por %p99, %p100
      %p102 = scmp.ne.s32.totalorder %s94, %s97
      %p103 = scmp.eq.s32.totalorder %s11, 0
      %p104 = por %p102, %p103
      %p105 = scmp.ne.s32.totalorder %s94, %s97
      %p106 = scmp.eq.s32.totalorder %s16, 2
      %p107 = por %p105, %p106
      %p108 = scmp.ne.s32.totalorder %s97, %s98
      %p109 = scmp.eq.s32.totalorder %s16, 0
      %p110 = por %p108, %p109
      %p111 = scmp.ne.s32.totalorder %s97, %s98
      %p112 = scmp.eq.s32.totalorder %s17, 2
      %p113 = por %p111, %p112
      %p115 = scmp.ne.s32.totalorder %s98, %s114
      %p116 = scmp.eq.s32.totalorder %s17, 0
      %p117 = por %p115, %p116
      %s118 = ssub.s32 %s11, %s18
      %p119 = scmp.eq.s32.totalorder %s118, 0
      %s121 = sadd.s32 %s120, 1
      %s122 = scalar_select %p119, %s120, %s121
      %p125 = pneg %p119
      %p126 = scmp.eq.s32.totalorder %s11, 2
      %p127 = por %p125, %p126
      %p128 = scmp.ne.s32.totalorder %s120, %s123
      %p129 = scmp.eq.s32.totalorder %s11, 0
      %p130 = por %p128, %p129
      %p131 = scmp.ne.s32.totalorder %s120, %s123
      %p132 = scmp.eq.s32.totalorder %s16, 2
      %p133 = por %p131, %p132
      %p134 = scmp.ne.s32.totalorder %s123, %s124
      %p135 = scmp.eq.s32.totalorder %s16, 0
      %p136 = por %p134, %p135
      %p137 = scmp.ne.s32.totalorder %s123, %s124
      %p138 = scmp.eq.s32.totalorder %s17, 2
      %p139 = por %p137, %p138
      %p141 = scmp.ne.s32.totalorder %s124, %s140
      %p142 = scmp.eq.s32.totalorder %s17, 0
      %p143 = por %p141, %p142
      %p144 = scmp.le.s32.totalorder 1, %s11
      %p145 = scmp.lt.s32.totalorder %s11, 4
      %p146 = pnand %p144, %p145
      %p147 = pneg %p146
      // Predicated region
      $region9: #{basic_block_forward.2} parent=5 // pred_check
        _
      $region10: #{basic_block_forward.2} parent=5 // pred_check_branch
        %149 = sbr.rel (%p146) target = $region12
      $region11: #{basic_block_forward.2} parent=5 // pred_region
        %s150 = ssub.s32 %s11, 1
        // Predicated region
        $region13: #{basic_block_forward.2} parent=11 // pred_check
          %p151 = pneg %p32
        $region14: #{basic_block_forward.2} parent=11 // pred_check_branch
          %153 = sbr.rel (%p151) target = $region16
        $region15: #{basic_block_forward.2} parent=11 // pred_region
          _
        $region16: #{basic_block_forward.2} parent=11 // pred_fallthru
          _
      $region12: #{basic_block_forward.2} parent=5 // pred_fallthru
        _
      %p154 = scmp.lt.s32.totalorder %s11, 3
      // Predicated region
      $region17: #{basic_block_forward.2} parent=5 // pred_check
        %p155 = pneg %p154
      $region18: #{basic_block_forward.2} parent=5 // pred_check_branch
        %157 = sbr.rel (%p155) target = $region20
      $region19: #{basic_block_forward.2} parent=5 // pred_region
        // Predicated region
        $region21: #{basic_block_forward.2} parent=19 // pred_check
          %p158 = pneg %p52
        $region22: #{basic_block_forward.2} parent=19 // pred_check_branch
          %160 = sbr.rel (%p158) target = $region24
        $region23: #{basic_block_forward.2} parent=19 // pred_region
          %s161 = sand.u32 %s42, 1
          %s162 = sand.u32 %s42, 1
          %s163 = smul.addr %s162, 128
          %s164 = scalar_lea.vmem [#allocation2], %s163
          %s165 = smul.addr %s11, 4
          %s166 = scalar_lea.vmem %s1, %s165
          // Predicated region
          $region25: #{basic_block_forward.2} parent=23 // pred_check
            _
          $region26: #{basic_block_forward.2} parent=23 // pred_check_branch
            %168 = sbr.rel (0) target = $region28
          $region27: #{basic_block_forward.2} parent=23 // pred_region
            // Predicated region
            $region29: #{basic_block_forward.2} parent=27 // pred_check
              _
            $region30: #{basic_block_forward.2} parent=27 // pred_check_branch
              %170 = sbr.rel target = $region32
            $region31: #{basic_block_forward.2} parent=27 // pred_region
              // Predicated region
              $region44: #{basic_block_forward.2} parent=31 // pred_check
                _
              $region45: #{basic_block_forward.2} parent=31 // pred_check_branch
                %247 = sbr.rel (0) target = $region47
              $region46: #{basic_block_forward.2} parent=31 // pred_region
                loop: start=0, step=1, limit=1
                $region48: #{basic_block_forward.2} parent=46 // loop_pre_header
                  _
                $region49: #{basic_block_forward.2} parent=46 // loop_header
                  %s249 = sphi 0, %s253
                  %p250 = scmp.ge.s32.totalorder %s249, 1
                  %s254 = sphi %s166, %s166
                  %s255 = sphi %s164, %s164
                $region50: #{basic_block_forward.2} parent=46 // loop_header_branch
                  %252 = sbr.rel (%p250) target = $region54
                $region51: #{basic_block_forward.2} parent=46 // loop_body
                  _
                $region52: #{basic_block_forward.2} parent=46 // loop_footer
                  %s253 = sadd.s32 1, %s249
                $region53: #{basic_block_forward.2} parent=46 // loop_footer_branch
                  %248 = sbr.rel target = $region49
                $region54: #{basic_block_forward.2} parent=46 // loop_exit
                  _
                loop: start=0, step=1, limit=1
                $region55: #{basic_block_forward.2} parent=46 // loop_pre_header
                  _
                $region56: #{basic_block_forward.2} parent=46 // loop_header
                  %s258 = sphi 0, %s262
                  %p259 = scmp.ge.s32.totalorder %s258, 1
                  %s263 = sphi %s166, %s166
                  %s264 = sphi %s164, %s164
                $region57: #{basic_block_forward.2} parent=46 // loop_header_branch
                  %261 = sbr.rel (%p259) target = $region61
                $region58: #{basic_block_forward.2} parent=46 // loop_body
                  %v265 = vld [vmem:[%s263] sm:$0xf]
                  %266 = vst [vmem:[%s264] sm:$0xf] %v265
                  %v267 = vld [vmem:[%s263 + $0xc] sm:$0xf]
                  %268 = vst [vmem:[%s264 + $0x4] sm:$0xf] %v267
                  %v269 = vld [vmem:[%s263 + $0x18] sm:$0xf]
                  %270 = vst [vmem:[%s264 + $0x8] sm:$0xf] %v269
                  %v271 = vld [vmem:[%s263 + $0x24] sm:$0xf]
                  %272 = vst [vmem:[%s264 + $0xc] sm:$0xf] %v271
                  %v273 = vld [vmem:[%s263 + $0x30] sm:$0xf]
                  %274 = vst [vmem:[%s264 + $0x10] sm:$0xf] %v273
                  %v275 = vld [vmem:[%s263 + $0x3c] sm:$0xf]
                  %276 = vst [vmem:[%s264 + $0x14] sm:$0xf] %v275
                  %v277 = vld [vmem:[%s263 + $0x48] sm:$0xf]
                  %278 = vst [vmem:[%s264 + $0x18] sm:$0xf] %v277
                  %v279 = vld [vmem:[%s263 + $0x54] sm:$0xf]
                  %280 = vst [vmem:[%s264 + $0x1c] sm:$0xf] %v279
                  %v281 = vld [vmem:[%s263 + $0x60] sm:$0xf]
                  %282 = vst [vmem:[%s264 + $0x20] sm:$0xf] %v281
                  %v283 = vld [vmem:[%s263 + $0x6c] sm:$0xf]
                  %284 = vst [vmem:[%s264 + $0x24] sm:$0xf] %v283
                  %v285 = vld [vmem:[%s263 + $0x78] sm:$0xf]
                  %286 = vst [vmem:[%s264 + $0x28] sm:$0xf] %v285
                  %v287 = vld [vmem:[%s263 + $0x84] sm:$0xf]
                  %288 = vst [vmem:[%s264 + $0x2c] sm:$0xf] %v287
                  %v289 = vld [vmem:[%s263 + $0x90] sm:$0xf]
                  %290 = vst [vmem:[%s264 + $0x30] sm:$0xf] %v289
                  %v291 = vld [vmem:[%s263 + $0x9c] sm:$0xf]
                  %292 = vst [vmem:[%s264 + $0x34] sm:$0xf] %v291
                  %v293 = vld [vmem:[%s263 + $0xa8] sm:$0xf]
                  %294 = vst [vmem:[%s264 + $0x38] sm:$0xf] %v293
                  %v295 = vld [vmem:[%s263 + $0xb4] sm:$0xf]
                  %296 = vst [vmem:[%s264 + $0x3c] sm:$0xf] %v295
                  %v297 = vld [vmem:[%s263 + $0xc0] sm:$0xf]
                  %298 = vst [vmem:[%s264 + $0x40] sm:$0xf] %v297
                  %v299 = vld [vmem:[%s263 + $0xcc] sm:$0xf]
                  %300 = vst [vmem:[%s264 + $0x44] sm:$0xf] %v299
                  %v301 = vld [vmem:[%s263 + $0xd8] sm:$0xf]
                  %302 = vst [vmem:[%s264 + $0x48] sm:$0xf] %v301
                  %v303 = vld [vmem:[%s263 + $0xe4] sm:$0xf]
                  %304 = vst [vmem:[%s264 + $0x4c] sm:$0xf] %v303
                  %v305 = vld [vmem:[%s263 + $0xf0] sm:$0xf]
                  %306 = vst [vmem:[%s264 + $0x50] sm:$0xf] %v305
                  %v307 = vld [vmem:[%s263 + $0xfc] sm:$0xf]
                  %308 = vst [vmem:[%s264 + $0x54] sm:$0xf] %v307
                  %v309 = vld [vmem:[%s263 + $0x108] sm:$0xf]
                  %310 = vst [vmem:[%s264 + $0x58] sm:$0xf] %v309
                  %v311 = vld [vmem:[%s263 + $0x114] sm:$0xf]
                  %312 = vst [vmem:[%s264 + $0x5c] sm:$0xf] %v311
                  %v313 = vld [vmem:[%s263 + $0x120] sm:$0xf]
                  %314 = vst [vmem:[%s264 + $0x60] sm:$0xf] %v313
                  %v315 = vld [vmem:[%s263 + $0x12c] sm:$0xf]
                  %316 = vst [vmem:[%s264 + $0x64] sm:$0xf] %v315
                  %v317 = vld [vmem:[%s263 + $0x138] sm:$0xf]
                  %318 = vst [vmem:[%s264 + $0x68] sm:$0xf] %v317
                  %v319 = vld [vmem:[%s263 + $0x144] sm:$0xf]
                  %320 = vst [vmem:[%s264 + $0x6c] sm:$0xf] %v319
                  %v321 = vld [vmem:[%s263 + $0x150] sm:$0xf]
                  %322 = vst [vmem:[%s264 + $0x70] sm:$0xf] %v321
                  %v323 = vld [vmem:[%s263 + $0x15c] sm:$0xf]
                  %324 = vst [vmem:[%s264 + $0x74] sm:$0xf] %v323
                  %v325 = vld [vmem:[%s263 + $0x168] sm:$0xf]
                  %326 = vst [vmem:[%s264 + $0x78] sm:$0xf] %v325
                  %v327 = vld [vmem:[%s263 + $0x174] sm:$0xf]
                  %328 = vst [vmem:[%s264 + $0x7c] sm:$0xf] %v327
                $region59: #{basic_block_forward.2} parent=46 // loop_footer
                  %s262 = sadd.s32 1, %s258
                $region60: #{basic_block_forward.2} parent=46 // loop_footer_branch
                  %257 = sbr.rel target = $region56
                $region61: #{basic_block_forward.2} parent=46 // loop_exit
                  _
              $region47: #{basic_block_forward.2} parent=31 // pred_fallthru
                _
            $region32: #{basic_block_forward.2} parent=27 // pred_fallthru
              _
            // Predicated region
            $region33: #{basic_block_forward.2} parent=27 // pred_check
              _
            $region34: #{basic_block_forward.2} parent=27 // pred_check_branch
              %172 = sbr.rel (0) target = $region36
            $region35: #{basic_block_forward.2} parent=27 // pred_region
              loop: start=0, step=1, limit=1
              $region37: #{basic_block_forward.2} parent=35 // loop_pre_header
                _
              $region38: #{basic_block_forward.2} parent=35 // loop_header
                %s175 = sphi 0, %s179
                %p176 = scmp.ge.s32.totalorder %s175, 1
                %s180 = sphi %s166, %s166
                %s181 = sphi %s164, %s164
              $region39: #{basic_block_forward.2} parent=35 // loop_header_branch
                %178 = sbr.rel (%p176) target = $region43
              $region40: #{basic_block_forward.2} parent=35 // loop_body
                %v182 = vld [vmem:[%s180] sm:$0xf]
                %183 = vst [vmem:[%s181] sm:$0xf] %v182
                %v184 = vld [vmem:[%s180 + $0xc] sm:$0xf]
                %185 = vst [vmem:[%s181 + $0x4] sm:$0xf] %v184
                %v186 = vld [vmem:[%s180 + $0x18] sm:$0xf]
                %187 = vst [vmem:[%s181 + $0x8] sm:$0xf] %v186
                %v188 = vld [vmem:[%s180 + $0x24] sm:$0xf]
                %189 = vst [vmem:[%s181 + $0xc] sm:$0xf] %v188
                %v190 = vld [vmem:[%s180 + $0x30] sm:$0xf]
                %191 = vst [vmem:[%s181 + $0x10] sm:$0xf] %v190
                %v192 = vld [vmem:[%s180 + $0x3c] sm:$0xf]
                %193 = vst [vmem:[%s181 + $0x14] sm:$0xf] %v192
                %v194 = vld [vmem:[%s180 + $0x48] sm:$0xf]
                %195 = vst [vmem:[%s181 + $0x18] sm:$0xf] %v194
                %v196 = vld [vmem:[%s180 + $0x54] sm:$0xf]
                %197 = vst [vmem:[%s181 + $0x1c] sm:$0xf] %v196
                %v198 = vld [vmem:[%s180 + $0x60] sm:$0xf]
                %199 = vst [vmem:[%s181 + $0x20] sm:$0xf] %v198
                %v200 = vld [vmem:[%s180 + $0x6c] sm:$0xf]
                %201 = vst [vmem:[%s181 + $0x24] sm:$0xf] %v200
                %v202 = vld [vmem:[%s180 + $0x78] sm:$0xf]
                %203 = vst [vmem:[%s181 + $0x28] sm:$0xf] %v202
                %v204 = vld [vmem:[%s180 + $0x84] sm:$0xf]
                %205 = vst [vmem:[%s181 + $0x2c] sm:$0xf] %v204
                %v206 = vld [vmem:[%s180 + $0x90] sm:$0xf]
                %207 = vst [vmem:[%s181 + $0x30] sm:$0xf] %v206
                %v208 = vld [vmem:[%s180 + $0x9c] sm:$0xf]
                %209 = vst [vmem:[%s181 + $0x34] sm:$0xf] %v208
                %v210 = vld [vmem:[%s180 + $0xa8] sm:$0xf]
                %211 = vst [vmem:[%s181 + $0x38] sm:$0xf] %v210
                %v212 = vld [vmem:[%s180 + $0xb4] sm:$0xf]
                %213 = vst [vmem:[%s181 + $0x3c] sm:$0xf] %v212
                %v214 = vld [vmem:[%s180 + $0xc0] sm:$0xf]
                %215 = vst [vmem:[%s181 + $0x40] sm:$0xf] %v214
                %v216 = vld [vmem:[%s180 + $0xcc] sm:$0xf]
                %217 = vst [vmem:[%s181 + $0x44] sm:$0xf] %v216
                %v218 = vld [vmem:[%s180 + $0xd8] sm:$0xf]
                %219 = vst [vmem:[%s181 + $0x48] sm:$0xf] %v218
                %v220 = vld [vmem:[%s180 + $0xe4] sm:$0xf]
                %221 = vst [vmem:[%s181 + $0x4c] sm:$0xf] %v220
                %v222 = vld [vmem:[%s180 + $0xf0] sm:$0xf]
                %223 = vst [vmem:[%s181 + $0x50] sm:$0xf] %v222
                %v224 = vld [vmem:[%s180 + $0xfc] sm:$0xf]
                %225 = vst [vmem:[%s181 + $0x54] sm:$0xf] %v224
                %v226 = vld [vmem:[%s180 + $0x108] sm:$0xf]
                %227 = vst [vmem:[%s181 + $0x58] sm:$0xf] %v226
                %v228 = vld [vmem:[%s180 + $0x114] sm:$0xf]
                %229 = vst [vmem:[%s181 + $0x5c] sm:$0xf] %v228
                %v230 = vld [vmem:[%s180 + $0x120] sm:$0xf]
                %231 = vst [vmem:[%s181 + $0x60] sm:$0xf] %v230
                %v232 = vld [vmem:[%s180 + $0x12c] sm:$0xf]
                %233 = vst [vmem:[%s181 + $0x64] sm:$0xf] %v232
                %v234 = vld [vmem:[%s180 + $0x138] sm:$0xf]
                %235 = vst [vmem:[%s181 + $0x68] sm:$0xf] %v234
                %v236 = vld [vmem:[%s180 + $0x144] sm:$0xf]
                %237 = vst [vmem:[%s181 + $0x6c] sm:$0xf] %v236
                %v238 = vld [vmem:[%s180 + $0x150] sm:$0xf]
                %239 = vst [vmem:[%s181 + $0x70] sm:$0xf] %v238
                %v240 = vld [vmem:[%s180 + $0x15c] sm:$0xf]
                %241 = vst [vmem:[%s181 + $0x74] sm:$0xf] %v240
                %v242 = vld [vmem:[%s180 + $0x168] sm:$0xf]
                %243 = vst [vmem:[%s181 + $0x78] sm:$0xf] %v242
                %v244 = vld [vmem:[%s180 + $0x174] sm:$0xf]
                %245 = vst [vmem:[%s181 + $0x7c] sm:$0xf] %v244
              $region41: #{basic_block_forward.2} parent=35 // loop_footer
                %s179 = sadd.s32 1, %s175
              $region42: #{basic_block_forward.2} parent=35 // loop_footer_branch
                %174 = sbr.rel target = $region38
              $region43: #{basic_block_forward.2} parent=35 // loop_exit
                _
            $region36: #{basic_block_forward.2} parent=27 // pred_fallthru
              _
          $region28: #{basic_block_forward.2} parent=23 // pred_fallthru
            _
          %329 = vnop
        $region24: #{basic_block_forward.2} parent=19 // pred_fallthru
          _
      $region20: #{basic_block_forward.2} parent=5 // pred_fallthru
        _
      %p330 = scmp.le.s32.totalorder 1, %s11
      %p331 = scmp.lt.s32.totalorder %s11, 4
      %p332 = pnand %p330, %p331
      %p333 = pneg %p332
      // Predicated region
      $region62: #{basic_block_forward.2} parent=5 // pred_check
        _
      $region63: #{basic_block_forward.2} parent=5 // pred_check_branch
        %335 = sbr.rel (%p332) target = $region65
      $region64: #{basic_block_forward.2} parent=5 // pred_region
        %s336 = ssub.s32 %s11, 1
        %s337 = sand.u32 %s45, 1
        %s338 = sand.u32 %s45, 1
        %s339 = smul.addr %s338, 128
        %s340 = scalar_lea.vmem [#allocation2], %s339
        // Predicated region
        $region66: #{basic_block_forward.2} parent=64 // pred_check
          %p341 = pneg %p58
        $region67: #{basic_block_forward.2} parent=64 // pred_check_branch
          %343 = sbr.rel (%p341) target = $region69
        $region68: #{basic_block_forward.2} parent=64 // pred_region
          _
        $region69: #{basic_block_forward.2} parent=64 // pred_fallthru
          _
        %p344 = pneg %p32
        %p345 = pneg %p29
        %s346 = sand.u32 %s45, 1
        %s347 = sand.u32 %s45, 1
        %s348 = smul.addr %s347, 128
        %s349 = scalar_lea.vmem [#allocation2], %s348
        %p350 = pneg %p58
        %p351 = pneg %p55
        %p352 = pneg %p84
        %p353 = pneg %p81
        %p354 = scmp.lt.s32.totalorder %s16, 2
        %s355 = scalar_select %p354, %s16, 2
        %s356 = smul.addr %s355, 8
        %s357 = scalar_lea.vmem %s2, %s356
        %p358 = pneg %p110
        %p359 = pneg %p107
        %p360 = scmp.lt.s32.totalorder %s16, 2
        %s361 = scalar_select %p360, %s16, 2
        %s362 = smul.addr %s361, 8
        %s363 = scalar_lea.vmem %s3, %s362
        %p364 = pneg %p136
        %p365 = pneg %p133
        %p366 = scmp.lt.s32.totalorder %s16, 2
        %s367 = scalar_select %p366, %s16, 2
        %s368 = smul.addr %s367, 8
        %s369 = scalar_lea.vmem %s4, %s368
        %p370 = scmp.lt.s32.totalorder %s16, 2
        %s371 = scalar_select %p370, %s16, 2
        %s372 = smul.addr %s371, 8
        %s373 = scalar_lea.vmem %s2, %s372
        %p374 = scmp.lt.s32.totalorder %s16, 2
        %s375 = scalar_select %p374, %s16, 2
        %s376 = smul.addr %s375, 8
        %s377 = scalar_lea.vmem %s3, %s376
        %p378 = scmp.lt.s32.totalorder %s16, 2
        %s379 = scalar_select %p378, %s16, 2
        %s380 = smul.addr %s379, 8
        %s381 = scalar_lea.vmem %s4, %s380
        %v383 = vld [vmem:[%s0] sm:$0xff]
        %v384 = vld [vmem:[%s340] sm:$0xf]
        %v385 = vld [vmem:[%s340 + $0x4] sm:$0xf]
        %v386 = vld [vmem:[%s340 + $0x8] sm:$0xf]
        %v387 = vld [vmem:[%s340 + $0xc] sm:$0xf]
        %v388 = vld [vmem:[%s340 + $0x10] sm:$0xf]
        %v389 = vld [vmem:[%s340 + $0x14] sm:$0xf]
        %v390 = vld [vmem:[%s340 + $0x18] sm:$0xf]
        %v391 = vld [vmem:[%s340 + $0x1c] sm:$0xf]
        %v392 = vld [vmem:[%s340 + $0x20] sm:$0xf]
        %v393 = vld [vmem:[%s340 + $0x24] sm:$0xf]
        %v394 = vld [vmem:[%s340 + $0x28] sm:$0xf]
        %v395 = vld [vmem:[%s340 + $0x2c] sm:$0xf]
        %v396 = vld [vmem:[%s340 + $0x30] sm:$0xf]
        %v397 = vld [vmem:[%s340 + $0x34] sm:$0xf]
        %v398 = vld [vmem:[%s340 + $0x38] sm:$0xf]
        %v399 = vld [vmem:[%s340 + $0x3c] sm:$0xf]
        %v400 = vld [vmem:[%s340 + $0x40] sm:$0xf]
        %v401 = vld [vmem:[%s340 + $0x44] sm:$0xf]
        %v402 = vld [vmem:[%s340 + $0x48] sm:$0xf]
        %v403 = vld [vmem:[%s340 + $0x4c] sm:$0xf]
        %v404 = vld [vmem:[%s340 + $0x50] sm:$0xf]
        %v405 = vld [vmem:[%s340 + $0x54] sm:$0xf]
        %v406 = vld [vmem:[%s340 + $0x58] sm:$0xf]
        %v407 = vld [vmem:[%s340 + $0x5c] sm:$0xf]
        %v408 = vld [vmem:[%s340 + $0x60] sm:$0xf]
        %v409 = vld [vmem:[%s340 + $0x64] sm:$0xf]
        %v410 = vld [vmem:[%s340 + $0x68] sm:$0xf]
        %v411 = vld [vmem:[%s340 + $0x6c] sm:$0xf]
        %v412 = vld [vmem:[%s340 + $0x70] sm:$0xf]
        %v413 = vld [vmem:[%s340 + $0x74] sm:$0xf]
        %v414 = vld [vmem:[%s340 + $0x78] sm:$0xf]
        %v415 = vld [vmem:[%s340 + $0x7c] sm:$0xf]
        %v417 = vunpack.c.l.b16 %v383
        %v418 = vunpack.c.h.b16 %v383
        %v419 = vpack.c.b16 %v417, %v417
        %v420 = vpack.c.b16 %v418, %v418
        %v455 = vunpack.c.l.b16 %v384
        %v456 = vunpack.c.l.b16 %v385
        %v457 = vunpack.c.l.b16 %v386
        %v458 = vunpack.c.l.b16 %v387
        %v459 = vunpack.c.l.b16 %v388
        %v460 = vunpack.c.l.b16 %v389
        %v461 = vunpack.c.l.b16 %v390
        %v462 = vunpack.c.l.b16 %v391
        %v463 = vunpack.c.l.b16 %v392
        %v464 = vunpack.c.l.b16 %v393
        %v465 = vunpack.c.l.b16 %v394
        %v466 = vunpack.c.l.b16 %v395
        %v467 = vunpack.c.l.b16 %v396
        %v468 = vunpack.c.l.b16 %v397
        %v469 = vunpack.c.l.b16 %v398
        %v470 = vunpack.c.l.b16 %v399
        %v471 = vunpack.c.l.b16 %v400
        %v472 = vunpack.c.l.b16 %v401
        %v473 = vunpack.c.l.b16 %v402
        %v474 = vunpack.c.l.b16 %v403
        %v475 = vunpack.c.l.b16 %v404
        %v476 = vunpack.c.l.b16 %v405
        %v477 = vunpack.c.l.b16 %v406
        %v478 = vunpack.c.l.b16 %v407
        %v479 = vunpack.c.l.b16 %v408
        %v480 = vunpack.c.l.b16 %v409
        %v481 = vunpack.c.l.b16 %v410
        %v482 = vunpack.c.l.b16 %v411
        %v483 = vunpack.c.l.b16 %v412
        %v484 = vunpack.c.l.b16 %v413
        %v485 = vunpack.c.l.b16 %v414
        %v486 = vunpack.c.l.b16 %v415
        %v487 = vpack.c.b16 %v456, %v455
        %v488 = vpack.c.b16 %v458, %v457
        %v489 = vpack.c.b16 %v460, %v459
        %v490 = vpack.c.b16 %v462, %v461
        %v491 = vpack.c.b16 %v464, %v463
        %v492 = vpack.c.b16 %v466, %v465
        %v493 = vpack.c.b16 %v468, %v467
        %v494 = vpack.c.b16 %v470, %v469
        %v495 = vpack.c.b16 %v472, %v471
        %v496 = vpack.c.b16 %v474, %v473
        %v497 = vpack.c.b16 %v476, %v475
        %v498 = vpack.c.b16 %v478, %v477
        %v499 = vpack.c.b16 %v480, %v479
        %v500 = vpack.c.b16 %v482, %v481
        %v501 = vpack.c.b16 %v484, %v483
        %v502 = vpack.c.b16 %v486, %v485
        %519 = vmatprep.subr.bf16.mxu0 0
        %520 = vmatpush1.bf16.msra.mxu0 %v487
        %521 = vmatprep.subr.bf16.mxu0 0
        %522 = vmatpush1.bf16.msra.mxu0 %v488
        %523 = vmatprep.subr.bf16.mxu0 0
        %524 = vmatpush1.bf16.msra.mxu0 %v489
        %525 = vmatprep.subr.bf16.mxu0 0
        %526 = vmatpush1.bf16.msra.mxu0 %v490
        %527 = vmatprep.subr.bf16.mxu0 0
        %528 = vmatpush1.bf16.msra.mxu0 %v491
        %529 = vmatprep.subr.bf16.mxu0 0
        %530 = vmatpush1.bf16.msra.mxu0 %v492
        %531 = vmatprep.subr.bf16.mxu0 0
        %532 = vmatpush1.bf16.msra.mxu0 %v493
        %533 = vmatprep.subr.bf16.mxu0 0
        %534 = vmatpush1.bf16.msra.mxu0 %v494
        %535 = vmatprep.subr.bf16.mxu0 0
        %536 = vmatpush1.bf16.msra.mxu0 %v495
        %537 = vmatprep.subr.bf16.mxu0 0
        %538 = vmatpush1.bf16.msra.mxu0 %v496
        %539 = vmatprep.subr.bf16.mxu0 0
        %540 = vmatpush1.bf16.msra.mxu0 %v497
        %541 = vmatprep.subr.bf16.mxu0 0
        %542 = vmatpush1.bf16.msra.mxu0 %v498
        %543 = vmatprep.subr.bf16.mxu0 0
        %544 = vmatpush1.bf16.msra.mxu0 %v499
        %545 = vmatprep.subr.bf16.mxu0 0
        %546 = vmatpush1.bf16.msra.mxu0 %v500
        %547 = vmatprep.subr.bf16.mxu0 0
        %548 = vmatpush1.bf16.msra.mxu0 %v501
        %549 = vmatprep.subr.bf16.mxu0 0
        %550 = vmatpush1.bf16.msra.mxu0 %v502
        %551 = vmatprep.mubr.bf16.mxu0 %v420
        %552 = vmatmul.mubr.bf16.gmra.mrb[0].mxu0 %v419
        %v553 = vpop.f32.mrb[0].mxu0
        %v554 = vadd.f32 0.0, %v553
        %v555 = vpop.f32.mrb[0].mxu0
        %v556 = vpop.f32.mrb[0].mxu0
        %v557 = vpop.f32.mrb[0].mxu0
        %558 = vdwg.mxu0
        %559 = vst [vmem:[%s373] sm:$0xff] %v554
        %560 = vadd.xlane.f32.xlu0 %v554
        %v561 = vpop.xlane.xlu0 %560
        %vm562 = vcmask 7168
        %563 = vst.msk [vmem:[%s377] sm:$0xff] %vm562, %v561
        %v564 = vmul.f32 %v554, %v554
        %565 = vadd.xlane.f32.xlu0 %v564
        %v566 = vpop.xlane.xlu0 %565
        %567 = vst.msk [vmem:[%s381] sm:$0xff] %vm562, %v566
        %p568 = scmp.lt.s32.totalorder %s16, 2
        %s569 = scalar_select %p568, %s16, 2
        %s570 = smul.addr %s569, 8
        %s571 = scalar_lea.vmem %s2, %s570
        %p572 = scmp.lt.s32.totalorder %s16, 2
        %s573 = scalar_select %p572, %s16, 2
        %s574 = smul.addr %s573, 8
        %s575 = scalar_lea.vmem %s3, %s574
        %p576 = scmp.lt.s32.totalorder %s16, 2
        %s577 = scalar_select %p576, %s16, 2
        %s578 = smul.addr %s577, 8
        %s579 = scalar_lea.vmem %s4, %s578
        // Predicated region
        $region70: #{basic_block_forward.2} parent=64 // pred_check
          %p580 = pneg %p81
        $region71: #{basic_block_forward.2} parent=64 // pred_check_branch
          %582 = sbr.rel (%p580) target = $region73
        $region72: #{basic_block_forward.2} parent=64 // pred_region
          _
        $region73: #{basic_block_forward.2} parent=64 // pred_fallthru
          _
        // Predicated region
        $region74: #{basic_block_forward.2} parent=64 // pred_check
          %p583 = pneg %p107
        $region75: #{basic_block_forward.2} parent=64 // pred_check_branch
          %585 = sbr.rel (%p583) target = $region77
        $region76: #{basic_block_forward.2} parent=64 // pred_region
          _
        $region77: #{basic_block_forward.2} parent=64 // pred_fallthru
          _
        // Predicated region
        $region78: #{basic_block_forward.2} parent=64 // pred_check
          %p586 = pneg %p133
        $region79: #{basic_block_forward.2} parent=64 // pred_check_branch
          %588 = sbr.rel (%p586) target = $region81
        $region80: #{basic_block_forward.2} parent=64 // pred_region
          _
        $region81: #{basic_block_forward.2} parent=64 // pred_fallthru
          _
      $region65: #{basic_block_forward.2} parent=5 // pred_fallthru
        _
      %p589 = scmp.le.s32.totalorder 2, %s11
      // Predicated region
      $region82: #{basic_block_forward.2} parent=5 // pred_check
        %p590 = pneg %p589
      $region83: #{basic_block_forward.2} parent=5 // pred_check_branch
        %592 = sbr.rel (%p590) target = $region85
      $region84: #{basic_block_forward.2} parent=5 // pred_region
        %s593 = ssub.s32 %s11, 2
        // Predicated region
        $region86: #{basic_block_forward.2} parent=84 // pred_check
          %p594 = pneg %p87
        $region87: #{basic_block_forward.2} parent=84 // pred_check_branch
          %596 = sbr.rel (%p594) target = $region89
        $region88: #{basic_block_forward.2} parent=84 // pred_region
          %p597 = scmp.lt.s32.totalorder %s17, 2
          %s598 = scalar_select %p597, %s17, 2
          %s599 = smul.addr %s598, 8
          %s600 = scalar_lea.vmem %s2, %s599
        $region89: #{basic_block_forward.2} parent=84 // pred_fallthru
          _
        // Predicated region
        $region90: #{basic_block_forward.2} parent=84 // pred_check
          %p601 = pneg %p113
        $region91: #{basic_block_forward.2} parent=84 // pred_check_branch
          %603 = sbr.rel (%p601) target = $region93
        $region92: #{basic_block_forward.2} parent=84 // pred_region
          %p604 = scmp.lt.s32.totalorder %s17, 2
          %s605 = scalar_select %p604, %s17, 2
          %s606 = smul.addr %s605, 8
          %s607 = scalar_lea.vmem %s3, %s606
        $region93: #{basic_block_forward.2} parent=84 // pred_fallthru
          _
        // Predicated region
        $region94: #{basic_block_forward.2} parent=84 // pred_check
          %p608 = pneg %p139
        $region95: #{basic_block_forward.2} parent=84 // pred_check_branch
          %610 = sbr.rel (%p608) target = $region97
        $region96: #{basic_block_forward.2} parent=84 // pred_region
          %p611 = scmp.lt.s32.totalorder %s17, 2
          %s612 = scalar_select %p611, %s17, 2
          %s613 = smul.addr %s612, 8
          %s614 = scalar_lea.vmem %s4, %s613
        $region97: #{basic_block_forward.2} parent=84 // pred_fallthru
          _
      $region85: #{basic_block_forward.2} parent=5 // pred_fallthru
        _
    $region6: #{basic_block_forward.2} parent=1 // loop_footer
      %s15 = sadd.s32 1, %s11
    $region7: #{basic_block_forward.2} parent=1 // loop_footer_branch
      %10 = sbr.rel target = $region3
    $region8: #{basic_block_forward.2} parent=1 // loop_exit
      _

</llo_original>
